<compile_context>
chip_gen: v7x
topology: tpu7x:2x2x1
jax: 0.10.0
libtpu: 0.0.40
codegen_flags: <defaults>
</compile_context>

<pallas_src>
import functools
import math

import numpy as np
import jax
import jax.numpy as jnp
from jax import lax
from jax.experimental import pallas as pl
from jax.experimental.pallas import tpu as pltpu


def _build_avg_matrix(L, k):
    """(L, L) moving-average matrix matching SeriesDecomp's replicate padding.

    ma[l] = (1/k) * sum_{t=0..k-1} y[clip(l + t - (k-1)//2, 0, L-1)].
    """
    A = np.zeros((L, L), dtype=np.float32)
    if k <= 1:
        np.fill_diagonal(A, 1.0)
        return A
    h = (k - 1) // 2
    inv_k = 1.0 / k
    for l in range(L):
        for t in range(k):
            m = min(max(l + t - h, 0), L - 1)
            A[l, m] += inv_k
    return A


def _encoder_layer_kernel(x_ref, w1t_ref, w2t_ref, avg_ref, out_ref, *rest,
                          matmul_dtype, return_attn):
    # x_ref:   (Bb, L, D)   block of batch elements
    # w1t_ref: (D, D_ff)    conv1 weight, transposed (matmul_dtype)
    # w2t_ref: (D_ff, D)    conv2 weight, transposed (matmul_dtype)
    # avg_ref: (L, L)       moving-average matrix (matmul_dtype)
    attn_ref = rest[0] if return_attn else None

    x = x_ref[...].astype(jnp.float32)                       # (Bb, L, D)
    Bb, L, D = x.shape
    scale = 1.0 / math.sqrt(D)

    # --- full self-attention (q = k = v = x), batched over Bb ---------------
    xm = x.astype(matmul_dtype)
    xq = (x * scale).astype(matmul_dtype)   # fold 1/sqrt(D) into one operand
    # scores[b,l,m] = sum_d xq[b,l,d] * xm[b,m,d] -- contraction on the last
    # dim of both operands, so no explicit transpose is materialized.
    scores = lax.dot_general(
        xq, xm, dimension_numbers=(((2,), (2,)), ((0,), (0,))),
        preferred_element_type=jnp.float32)                  # (Bb, L, L) f32
    m = jnp.max(scores, axis=-1, keepdims=True)
    p = jnp.exp(scores - m)
    denom = jnp.sum(p, axis=-1, keepdims=True)

    if return_attn:
        attn = p / denom                                     # exact softmax rows
        att_out = lax.dot_general(
            attn.astype(matmul_dtype), xm,
            dimension_numbers=(((2,), (1,)), ((0,), (0,))),
            preferred_element_type=jnp.float32)              # (Bb, L, D) f32
        attn_ref[...] = attn.astype(attn_ref.dtype)
    else:
        # Skip the (Bb, L, L) normalization entirely: normalize the (Bb, L, D)
        # output with the EUP approximate reciprocal instead.
        pv = lax.dot_general(
            p.astype(matmul_dtype), xm,
            dimension_numbers=(((2,), (1,)), ((0,), (0,))),
            preferred_element_type=jnp.float32)
        att_out = pv * pl.reciprocal(denom, approx=True)

    # --- series decomposition on the MXU -------------------------------------
    avg_b = jnp.broadcast_to(avg_ref[...], (Bb, L, L))       # hoisted, used twice

    def decomp_residual(y):
        ma = lax.dot_general(
            avg_b, y.astype(matmul_dtype),
            dimension_numbers=(((2,), (1,)), ((0,), (0,))),
            preferred_element_type=jnp.float32)              # moving average
        return y - ma                                        # seasonal residual

    # --- residual + decomp1 ---------------------------------------------------
    y = x + att_out
    s = decomp_residual(y)

    # --- pointwise-conv FFN with residual ------------------------------------
    if L % 8 == 0:
        # Flatten (Bb, L) so the MXU sees Bb*L rows (layout-trivial reshape).
        s2 = s.reshape(Bb * L, D)
        hdn = jnp.maximum(
            jnp.dot(s2.astype(matmul_dtype), w1t_ref[...],
                    preferred_element_type=jnp.float32), 0.0)  # (Bb*L, D_ff)
        ffn = jnp.dot(hdn.astype(matmul_dtype), w2t_ref[...],
                      preferred_element_type=jnp.float32).reshape(Bb, L, D)
    else:
        # Avoid a relayout-forcing reshape: batched dot_general on broadcast
        # weights (keeps Bb > 1 even when L is not a multiple of 8).
        w1b = jnp.broadcast_to(w1t_ref[...], (Bb,) + tuple(w1t_ref.shape))
        w2b = jnp.broadcast_to(w2t_ref[...], (Bb,) + tuple(w2t_ref.shape))
        hdn = jnp.maximum(lax.dot_general(
            s.astype(matmul_dtype), w1b,
            dimension_numbers=(((2,), (1,)), ((0,), (0,))),
            preferred_element_type=jnp.float32), 0.0)
        ffn = lax.dot_general(
            hdn.astype(matmul_dtype), w2b,
            dimension_numbers=(((2,), (1,)), ((0,), (0,))),
            preferred_element_type=jnp.float32)
    z = s + ffn

    # --- decomp2 --------------------------------------------------------------
    out_ref[...] = decomp_residual(z).astype(out_ref.dtype)


def _vmem_bytes(Bb, L, D, D_ff, x_bytes, mm_bytes, attn_bytes, return_attn):
    """Rough per-step VMEM footprint (pipeline buffers + in-kernel temps)."""
    # Pipeline buffers: x/out double-buffered; weights + avg single-buffered.
    blocks = 2 * Bb * L * D * x_bytes * 2
    if return_attn:
        blocks += 2 * Bb * L * L * attn_bytes
    blocks += (2 * D * D_ff + L * L) * mm_bytes
    # In-kernel temporaries (f32 + matmul_dtype copies), generous upper bound.
    temps = (Bb * L * L * (3 * 4 + 2 * mm_bytes)       # scores / p / attn (+casts, avg bcast)
             + Bb * L * D * (6 * 4 + 3 * mm_bytes)     # x, y, s, z, att_out, out (+casts)
             + Bb * L * D_ff * (4 + mm_bytes))         # FFN hidden
    return blocks + temps


def _pick_batch_block(B, L, D, D_ff, x_bytes, mm_bytes, attn_bytes, return_attn,
                      *, target_rows=512, vmem_cap=40 << 20):
    """Batch elements per grid step.

    Fill the MXU M dim (Bb*L ~ target_rows) subject to a VMEM cap that is safe
    on v7x (64 MiB/TC); prefer an even number of grid steps so the two v7x
    TensorCores stay balanced under the parallel grid axis.
    """
    cap = max(1, min(B, max(1, target_rows // max(L, 1))))
    candidates = [bb for bb in range(1, cap + 1) if B % bb == 0]
    fits = [bb for bb in candidates
            if _vmem_bytes(bb, L, D, D_ff, x_bytes, mm_bytes, attn_bytes,
                           return_attn) <= vmem_cap]
    if not fits:
        fits = [1]
    even_steps = [bb for bb in fits if (B // bb) % 2 == 0]
    pool = even_steps if even_steps else fits
    return max(pool)


def _const_block_spec(shape):
    """BlockSpec with a constant index_map; single-buffered when supported."""
    idx = lambda b: (0,) * len(shape)
    if hasattr(pl, "Buffered"):
        try:
            return pl.BlockSpec(shape, idx, pipeline_mode=pl.Buffered(1))
        except TypeError:
            pass
    return pl.BlockSpec(shape, idx)


def encoder_layer(x, w1, w2, q_mva, *, matmul_dtype=jnp.bfloat16,
                  attn_dtype=jnp.bfloat16, return_attn=True):
    """x: (B, L, D). w1: (D_ff, D) conv1 weight. w2: (D, D_ff) conv2 weight.

    matmul_dtype: operand dtype for all MXU matmuls (accumulation stays f32).
    attn_dtype:   storage dtype of the returned attention map (default bf16 to
                  halve the largest HBM writeback).
    return_attn:  when False the attention map is neither normalized nor
                  written back; returns (out, None).
    Passing x in bf16 halves the input DMA (outputs then come back in bf16).
    """
    B, L, D = x.shape
    D_ff = w1.shape[0]
    k = int(q_mva)

    w1t = jnp.asarray(w1).T.astype(matmul_dtype)            # (D, D_ff)
    w2t = jnp.asarray(w2).T.astype(matmul_dtype)            # (D_ff, D)
    avg = jnp.asarray(_build_avg_matrix(L, k)).astype(matmul_dtype)  # (L, L)

    x_bytes = jnp.dtype(x.dtype).itemsize
    mm_bytes = jnp.dtype(matmul_dtype).itemsize
    attn_bytes = jnp.dtype(attn_dtype).itemsize

    Bb = _pick_batch_block(B, L, D, D_ff, x_bytes, mm_bytes, attn_bytes,
                           return_attn)
    nb = B // Bb

    kernel = functools.partial(_encoder_layer_kernel,
                               matmul_dtype=matmul_dtype,
                               return_attn=return_attn)

    in_specs = [
        pl.BlockSpec((Bb, L, D), lambda b: (b, 0, 0)),
        _const_block_spec((D, D_ff)),
        _const_block_spec((D_ff, D)),
        _const_block_spec((L, L)),
    ]
    out_block = pl.BlockSpec((Bb, L, D), lambda b: (b, 0, 0))
    if return_attn:
        out_specs = [out_block, pl.BlockSpec((Bb, L, L), lambda b: (b, 0, 0))]
        out_shape = (jax.ShapeDtypeStruct((B, L, D), x.dtype),
                     jax.ShapeDtypeStruct((B, L, L), attn_dtype))
    else:
        out_specs = out_block
        out_shape = jax.ShapeDtypeStruct((B, L, D), x.dtype)

    grid_spec = pltpu.PrefetchScalarGridSpec(
        num_scalar_prefetch=0,
        grid=(nb,),
        in_specs=in_specs,
        out_specs=out_specs,
    )

    # Accurate budget (block bytes already include double-buffer factors) plus
    # 25% headroom, capped at 48 MiB to stay safe under v7x's 64 MiB/TC VMEM.
    vmem_need = _vmem_bytes(Bb, L, D, D_ff, x_bytes, mm_bytes, attn_bytes,
                            return_attn)
    vmem_limit = int(min(max(int(vmem_need * 1.25), 16 << 20), 48 << 20))

    flops = (8 * B * L * L * D           # attention (x2) + decomp (x2) matmuls
             + 4 * B * L * D * D_ff)     # conv1 + conv2
    bytes_accessed = (2 * B * L * D * x_bytes
                      + (B * L * L * attn_bytes if return_attn else 0)
                      + (2 * D * D_ff + L * L) * mm_bytes)
    cost = pl.CostEstimate(flops=int(flops),
                           transcendentals=int(B * L * L),
                           bytes_accessed=int(bytes_accessed))

    result = pl.pallas_call(
        kernel,
        out_shape=out_shape,
        grid_spec=grid_spec,
        compiler_params=pltpu.CompilerParams(
            dimension_semantics=("parallel",),
            vmem_limit_bytes=vmem_limit,
        ),
        cost_estimate=cost,
    )(x, w1t, w2t, avg)

    if return_attn:
        out, attn = result
        return out, attn
    return result, None


# ----------------------------- pure-JAX reference -----------------------------

def _moving_average_ref(y, k):
    B, L, D = y.shape
    h = (k - 1) // 2
    front = jnp.repeat(y[:, :1, :], h, axis=1)
    back = jnp.repeat(y[:, -1:, :], k - 1 - h, axis=1)
    yp = jnp.concatenate([front, y, back], axis=1)
    acc = yp[:, 0:L, :]
    for t in range(1, k):
        acc = acc + yp[:, t:t + L, :]
    return acc / k


def encoder_layer_ref(x, w1, w2, q_mva):
    hp = lax.Precision.HIGHEST
    B, L, D = x.shape
    scale = 1.0 / math.sqrt(D)
    scores = jnp.einsum("bld,bmd->blm", x, x, precision=hp) * scale
    attn = jax.nn.softmax(scores, axis=-1)
    att_out = jnp.einsum("blm,bmd->bld", attn, x, precision=hp)
    y = x + att_out
    s = y - _moving_average_ref(y, q_mva)
    h = jnp.maximum(jnp.einsum("bld,fd->blf", s, w1, precision=hp), 0.0)
    z = s + jnp.einsum("blf,df->bld", h, w2, precision=hp)
    out = z - _moving_average_ref(z, q_mva)
    return out, attn


if __name__ == "__main__":
    B, L, D_model = 2, 16, 32
    D_ff = 4 * D_model
    q_mva = 5

    key = jax.random.PRNGKey(0)
    kx, k1, k2 = jax.random.split(key, 3)
    x = jax.random.normal(kx, (B, L, D_model), dtype=jnp.float32)
    # Conv1d(D_model, D_ff, 1, bias=False) weight: (D_ff, D_model); likewise conv2.
    w1 = jax.random.normal(k1, (D_ff, D_model), dtype=jnp.float32) * (1.0 / math.sqrt(D_model))
    w2 = jax.random.normal(k2, (D_model, D_ff), dtype=jnp.float32) * (1.0 / math.sqrt(D_ff))

    ref_out, ref_attn = encoder_layer_ref(x, w1, w2, q_mva)

    # Structural-correctness gate: f32 matmul operands + f32 attention storage.
    out32, attn32 = jax.block_until_ready(
        encoder_layer(x, w1, w2, q_mva, matmul_dtype=jnp.float32,
                      attn_dtype=jnp.float32))
    np.testing.assert_allclose(np.asarray(attn32), np.asarray(ref_attn),
                               rtol=1e-2, atol=1e-2)
    np.testing.assert_allclose(np.asarray(out32), np.asarray(ref_out),
                               rtol=1e-2, atol=1e-2)

    # Default fast path: bf16 matmul operands (f32 accumulation), bf16 attn.
    out, attn = jax.block_until_ready(encoder_layer(x, w1, w2, q_mva))
    np.testing.assert_allclose(np.asarray(attn.astype(jnp.float32)),
                               np.asarray(ref_attn), rtol=1e-1, atol=2e-2)
    np.testing.assert_allclose(np.asarray(out), np.asarray(ref_out),
                               rtol=1e-1, atol=1e-1)

    # No-attention fast path: skips the (B, L, L) HBM writeback entirely.
    out_na, attn_na = encoder_layer(x, w1, w2, q_mva, return_attn=False)
    out_na = jax.block_until_ready(out_na)
    assert attn_na is None
    np.testing.assert_allclose(np.asarray(out_na), np.asarray(ref_out),
                               rtol=1e-1, atol=1e-1)

    print("KERNEL_OK")
</pallas_src>

<mosaic_0001>
module attributes {stable_mosaic.version = 11 : i64} {
  func.func @_encoder_layer_kernel(%arg0: i32, %arg1: memref<1x16x32xf32, #tpu.memory_space<vmem>>, %arg2: memref<32x128xf32, #tpu.memory_space<vmem>>, %arg3: memref<128x32xf32, #tpu.memory_space<vmem>>, %arg4: memref<16x16xf32, #tpu.memory_space<vmem>>, %arg5: memref<1x16x32xf32, #tpu.memory_space<vmem>>, %arg6: memref<1x16x16xf32, #tpu.memory_space<vmem>>) attributes {dimension_semantics = [#tpu.dimension_semantics<parallel>], iteration_bounds = array<i64: 2>, scalar_prefetch = 0 : i64, scratch_operands = 0 : i64, tpu.core_type = #tpu.core_type<tc>, window_params = [{transform_indices = @transform_0, window_bounds = array<i64: 1, 16, 32>}, {pipeline_mode = #tpu.pipeline_mode<synchronous>, transform_indices = @transform_1, window_bounds = array<i64: 32, 128>}, {pipeline_mode = #tpu.pipeline_mode<synchronous>, transform_indices = @transform_2, window_bounds = array<i64: 128, 32>}, {pipeline_mode = #tpu.pipeline_mode<synchronous>, transform_indices = @transform_3, window_bounds = array<i64: 16, 16>}, {transform_indices = @transform_4, window_bounds = array<i64: 1, 16, 32>}, {transform_indices = @transform_5, window_bounds = array<i64: 1, 16, 16>}]} {
    %c0 = arith.constant 0 : index
    %c0_0 = arith.constant 0 : index
    %c0_1 = arith.constant 0 : index
    %0 = vector.load %arg1[%c0, %c0_0, %c0_1] : memref<1x16x32xf32, #tpu.memory_space<vmem>>, vector<1x16x32xf32>
    %cst = arith.constant 0.176776692 : f32
    %1 = vector.broadcast %cst : f32 to vector<1x16x32xf32>
    %2 = arith.mulf %0, %1 : vector<1x16x32xf32>
    %cst_2 = arith.constant dense<0.000000e+00> : vector<1x16x16xf32>
    %3 = tpu.matmul %2, %0, %cst_2 {dimension_numbers = #tpu.dot_dimension_numbers<[2], [2], [1], [1], [0, 0, 0, 1, 1, 1], [0], [0]>} : vector<1x16x32xf32>, vector<1x16x32xf32>, vector<1x16x16xf32> -> vector<1x16x16xf32>
    %cst_3 = arith.constant dense<0xFF800000> : vector<1x16xf32>
    %4 = vector.multi_reduction <maximumf>, %3, %cst_3 [2] : vector<1x16x16xf32> to vector<1x16xf32>
    %5 = vector.shape_cast %4 : vector<1x16xf32> to vector<1x16x1xf32>
    %6 = vector.broadcast %5 : vector<1x16x1xf32> to vector<1x16x16xf32>
    %7 = arith.subf %3, %6 : vector<1x16x16xf32>
    %8 = math.exp %7 : vector<1x16x16xf32>
    %cst_4 = arith.constant dense<0.000000e+00> : vector<1x16xf32>
    %9 = vector.multi_reduction <add>, %8, %cst_4 [2] : vector<1x16x16xf32> to vector<1x16xf32>
    %10 = vector.shape_cast %9 : vector<1x16xf32> to vector<1x16x1xf32>
    %11 = vector.broadcast %10 : vector<1x16x1xf32> to vector<1x16x16xf32>
    %12 = arith.divf %8, %11 : vector<1x16x16xf32>
    %cst_5 = arith.constant dense<0.000000e+00> : vector<1x16x32xf32>
    %13 = tpu.matmul %12, %0, %cst_5 {dimension_numbers = #tpu.dot_dimension_numbers<[2], [1], [1], [2], [0, 0, 0, 1, 1, 2], [0], [0]>} : vector<1x16x16xf32>, vector<1x16x32xf32>, vector<1x16x32xf32> -> vector<1x16x32xf32>
    %c0_6 = arith.constant 0 : index
    %c0_7 = arith.constant 0 : index
    %c0_8 = arith.constant 0 : index
    %14 = vector.load %arg6[%c0_6, %c0_7, %c0_8] : memref<1x16x16xf32, #tpu.memory_space<vmem>>, vector<1x16x16xf32>
    tpu.vector_store %arg6[%c0_6, %c0_7, %c0_8], %12 {strides = array<i32>} : memref<1x16x16xf32, #tpu.memory_space<vmem>>, vector<1x16x16xf32>,
    %c0_9 = arith.constant 0 : index
    %c0_10 = arith.constant 0 : index
    %15 = vector.load %arg4[%c0_9, %c0_10] : memref<16x16xf32, #tpu.memory_space<vmem>>, vector<16x16xf32>
    %16 = vector.shape_cast %15 : vector<16x16xf32> to vector<1x16x16xf32>
    %17 = arith.addf %0, %13 : vector<1x16x32xf32>
    %cst_11 = arith.constant dense<0.000000e+00> : vector<1x16x32xf32>
    %18 = tpu.matmul %16, %17, %cst_11 {dimension_numbers = #tpu.dot_dimension_numbers<[2], [1], [1], [2], [0, 0, 0, 1, 1, 2], [0], [0]>} : vector<1x16x16xf32>, vector<1x16x32xf32>, vector<1x16x32xf32> -> vector<1x16x32xf32>
    %19 = arith.subf %17, %18 : vector<1x16x32xf32>
    %20 = vector.shape_cast %19 : vector<1x16x32xf32> to vector<16x32xf32>
    %c0_12 = arith.constant 0 : index
    %c0_13 = arith.constant 0 : index
    %21 = vector.load %arg2[%c0_12, %c0_13] : memref<32x128xf32, #tpu.memory_space<vmem>>, vector<32x128xf32>
    %cst_14 = arith.constant dense<0.000000e+00> : vector<16x128xf32>
    %22 = tpu.matmul %20, %21, %cst_14 {dimension_numbers = #tpu.dot_dimension_numbers<[1], [0], [0], [1], [0, 0, 1, 1], [], []>} : vector<16x32xf32>, vector<32x128xf32>, vector<16x128xf32> -> vector<16x128xf32>
    %cst_15 = arith.constant 0.000000e+00 : f32
    %23 = vector.broadcast %cst_15 : f32 to vector<16x128xf32>
    %24 = arith.maximumf %22, %23 : vector<16x128xf32>
    %c0_16 = arith.constant 0 : index
    %c0_17 = arith.constant 0 : index
    %25 = vector.load %arg3[%c0_16, %c0_17] : memref<128x32xf32, #tpu.memory_space<vmem>>, vector<128x32xf32>
    %cst_18 = arith.constant dense<0.000000e+00> : vector<16x32xf32>
    %26 = tpu.matmul %24, %25, %cst_18 {dimension_numbers = #tpu.dot_dimension_numbers<[1], [0], [0], [1], [0, 0, 1, 1], [], []>} : vector<16x128xf32>, vector<128x32xf32>, vector<16x32xf32> -> vector<16x32xf32>
    %27 = vector.shape_cast %26 : vector<16x32xf32> to vector<1x16x32xf32>
    %28 = arith.addf %19, %27 : vector<1x16x32xf32>
    %cst_19 = arith.constant dense<0.000000e+00> : vector<1x16x32xf32>
    %29 = tpu.matmul %16, %28, %cst_19 {dimension_numbers = #tpu.dot_dimension_numbers<[2], [1], [1], [2], [0, 0, 0, 1, 1, 2], [0], [0]>} : vector<1x16x16xf32>, vector<1x16x32xf32>, vector<1x16x32xf32> -> vector<1x16x32xf32>
    %30 = arith.subf %28, %29 : vector<1x16x32xf32>
    %c0_20 = arith.constant 0 : index
    %c0_21 = arith.constant 0 : index
    %c0_22 = arith.constant 0 : index
    %31 = vector.load %arg5[%c0_20, %c0_21, %c0_22] : memref<1x16x32xf32, #tpu.memory_space<vmem>>, vector<1x16x32xf32>
    tpu.vector_store %arg5[%c0_20, %c0_21, %c0_22], %30 {strides = array<i32>} : memref<1x16x32xf32, #tpu.memory_space<vmem>>, vector<1x16x32xf32>,
    return
  }
  func.func @transform_0(%arg0: i32) -> (i32, i32, i32) {
    %c0_i32 = arith.constant 0 : i32
    %c0_i32_0 = arith.constant 0 : i32
    %c0_i32_1 = arith.constant 0 : i32
    return %arg0, %c0_i32, %c0_i32_0 : i32, i32, i32
  }
  func.func @transform_1(%arg0: i32) -> (i32, i32) {
    %c0_i32 = arith.constant 0 : i32
    %c0_i32_0 = arith.constant 0 : i32
    %c0_i32_1 = arith.constant 0 : i32
    return %c0_i32, %c0_i32_0 : i32, i32
  }
  func.func @transform_2(%arg0: i32) -> (i32, i32) {
    %c0_i32 = arith.constant 0 : i32
    %c0_i32_0 = arith.constant 0 : i32
    %c0_i32_1 = arith.constant 0 : i32
    return %c0_i32, %c0_i32_0 : i32, i32
  }
  func.func @transform_3(%arg0: i32) -> (i32, i32) {
    %c0_i32 = arith.constant 0 : i32
    %c0_i32_0 = arith.constant 0 : i32
    %c0_i32_1 = arith.constant 0 : i32
    return %c0_i32, %c0_i32_0 : i32, i32
  }
  func.func @transform_4(%arg0: i32) -> (i32, i32, i32) {
    %c0_i32 = arith.constant 0 : i32
    %c0_i32_0 = arith.constant 0 : i32
    %c0_i32_1 = arith.constant 0 : i32
    return %arg0, %c0_i32, %c0_i32_0 : i32, i32, i32
  }
  func.func @transform_5(%arg0: i32) -> (i32, i32, i32) {
    %c0_i32 = arith.constant 0 : i32
    %c0_i32_0 = arith.constant 0 : i32
    %c0_i32_1 = arith.constant 0 : i32
    return %arg0, %c0_i32, %c0_i32_0 : i32, i32, i32
  }
}

</mosaic_0001>

<llo_original>
// kernel: tpu_custom_call.1
$region0: #{tpu_custom_call.1}
  #allocation0 [shape = 'u32[]', space=smem, size = 0x4, offset = 0x4, fixed_abs, tag = 'smem constant byte address 0x4 - core index']
  #allocation1 [shape = 'u32[144,128]{1,0:T(1,128)}', space=vmem, size = 0x12000, scoped, tag = 'internal scratch']
  %s0 = inlined_call_operand.vmem [shape: f32[2,16,32], index: 0, kind: input, shape index: {}]
  %s1 = inlined_call_operand.vmem [shape: f32[32,128], index: 1, kind: input, shape index: {}]
  %s2 = inlined_call_operand.vmem [shape: f32[128,32], index: 2, kind: input, shape index: {}]
  %s3 = inlined_call_operand.vmem [shape: f32[16,16], index: 3, kind: input, shape index: {}]
  %s4 = inlined_call_operand.hbm [shape: f32[2,16,32], index: 4, kind: output, shape index: {0}]
  %s5 = inlined_call_operand.hbm [shape: f32[2,16,16], index: 5, kind: output, shape index: {1}]
  %6 = xla_tuple %s4, %s5
  %s7 = sld [smem:[#allocation0]]
  $region57: #{tpu_custom_call.1} parent=0
    _
  %s9 = ssub.s32 1, %s7
  %s10 = scalar_select 0, %s9, %s7
  $region1: #{tpu_custom_call.1} parent=0
    #allocation2 [shape = 'u8[16384]{0}', space=vmem, size = 0x4000, scoped, tag = 'output window, operand 0']
    #allocation3 [shape = 's32[2]{0}', space=sflag, size = 0x8, scoped, tag = 'scoped memory for tpu_custom_call.1']
    #allocation4 [shape = 'u8[16384]{0}', space=vmem, size = 0x4000, scoped, tag = 'output window, operand 1']
    #allocation5 [shape = 's32[2]{0}', space=sflag, size = 0x8, scoped, tag = 'scoped memory for tpu_custom_call.1']
    %11 = vsyncpa [#allocation3], 0
    %s12 = scalar_lea.sflag [#allocation3], 1
    %13 = vsyncpa %s12, 0
    %14 = vsyncpa [#allocation5], 0
    %s15 = scalar_lea.sflag [#allocation5], 1
    %16 = vsyncpa %s15, 0
    loop: start=0, step=1, limit=4
    $region2: #{tpu_custom_call.1} parent=1 // loop_pre_header
      _
    $region3: #{tpu_custom_call.1} parent=1 // loop_header
      %s18 = sphi 0, %s22
      %p19 = scmp.ge.s32.totalorder %s18, 4
      %s28 = sphi 0, %s30
      %s31 = sphi 0, %s28
      %s32 = sphi 0, %s31
      %s48 = sphi 0, %s32
      %s52 = sphi 0, %s52
      %s54 = sphi 0, %s52
      %s55 = sphi 0, %s54
      %s69 = sphi 0, %s55
      %s73 = sphi 0, %s73
      %s75 = sphi 0, %s73
      %s76 = sphi 0, %s75
      %s90 = sphi 0, %s76
      %s94 = sphi 0, %s94
      %s96 = sphi 0, %s94
      %s97 = sphi 0, %s96
      %s111 = sphi 0, %s97
      %s117 = sphi 0, %s119
      %s120 = sphi 0, %s117
      %s121 = sphi 0, %s120
      %s137 = sphi 0, %s121
      %s143 = sphi 0, %s145
      %s146 = sphi 0, %s143
      %s147 = sphi 0, %s146
      %s163 = sphi 0, %s147
    $region4: #{tpu_custom_call.1} parent=1 // loop_header_branch
      %21 = sbr.rel (%p19) target = $region8
    $region5: #{tpu_custom_call.1} parent=1 // loop_body
      %s23 = ssub.s32 %s18, 1
      %s24 = ssub.s32 %s18, 2
      %s25 = sadd.s32 %s18, 1
      %s26 = ssub.s32 %s18, %s25
      %p27 = scmp.eq.s32.totalorder %s26, 0
      %s29 = sadd.s32 %s28, 1
      %s30 = scalar_select %p27, %s28, %s29
      %p33 = pneg %p27
      %p34 = scmp.eq.s32.totalorder %s18, 1
      %p35 = por %p33, %p34
      %p36 = scmp.ne.s32.totalorder %s28, %s31
      %p37 = scmp.eq.s32.totalorder %s18, 0
      %p38 = por %p36, %p37
      %p39 = scmp.ne.s32.totalorder %s28, %s31
      %p40 = scmp.eq.s32.totalorder %s23, 1
      %p41 = por %p39, %p40
      %p42 = scmp.ne.s32.totalorder %s31, %s32
      %p43 = scmp.eq.s32.totalorder %s23, 0
      %p44 = por %p42, %p43
      %p45 = scmp.ne.s32.totalorder %s31, %s32
      %p46 = scmp.eq.s32.totalorder %s24, 1
      %p47 = por %p45, %p46
      %p49 = scmp.ne.s32.totalorder %s32, %s48
      %p50 = scmp.eq.s32.totalorder %s24, 0
      %p51 = por %p49, %p50
      %s53 = sadd.s32 %s52, 1
      %p56 = scmp.eq.s32.totalorder %s18, 1
      %p57 = scmp.ne.s32.totalorder %s52, %s54
      %p58 = scmp.eq.s32.totalorder %s18, 0
      %p59 = por %p57, %p58
      %p60 = scmp.ne.s32.totalorder %s52, %s54
      %p61 = scmp.eq.s32.totalorder %s23, 1
      %p62 = por %p60, %p61
      %p63 = scmp.ne.s32.totalorder %s54, %s55
      %p64 = scmp.eq.s32.totalorder %s23, 0
      %p65 = por %p63, %p64
      %p66 = scmp.ne.s32.totalorder %s54, %s55
      %p67 = scmp.eq.s32.totalorder %s24, 1
      %p68 = por %p66, %p67
      %p70 = scmp.ne.s32.totalorder %s55, %s69
      %p71 = scmp.eq.s32.totalorder %s24, 0
      %p72 = por %p70, %p71
      %s74 = sadd.s32 %s73, 1
      %p77 = scmp.eq.s32.totalorder %s18, 1
      %p78 = scmp.ne.s32.totalorder %s73, %s75
      %p79 = scmp.eq.s32.totalorder %s18, 0
      %p80 = por %p78, %p79
      %p81 = scmp.ne.s32.totalorder %s73, %s75
      %p82 = scmp.eq.s32.totalorder %s23, 1
      %p83 = por %p81, %p82
      %p84 = scmp.ne.s32.totalorder %s75, %s76
      %p85 = scmp.eq.s32.totalorder %s23, 0
      %p86 = por %p84, %p85
      %p87 = scmp.ne.s32.totalorder %s75, %s76
      %p88 = scmp.eq.s32.totalorder %s24, 1
      %p89 = por %p87, %p88
      %p91 = scmp.ne.s32.totalorder %s76, %s90
      %p92 = scmp.eq.s32.totalorder %s24, 0
      %p93 = por %p91, %p92
      %s95 = sadd.s32 %s94, 1
      %p98 = scmp.eq.s32.totalorder %s18, 1
      %p99 = scmp.ne.s32.totalorder %s94, %s96
      %p100 = scmp.eq.s32.totalorder %s18, 0
      %p101 = por %p99, %p100
      %p102 = scmp.ne.s32.totalorder %s94, %s96
      %p103 = scmp.eq.s32.totalorder %s23, 1
      %p104 = por %p102, %p103
      %p105 = scmp.ne.s32.totalorder %s96, %s97
      %p106 = scmp.eq.s32.totalorder %s23, 0
      %p107 = por %p105, %p106
      %p108 = scmp.ne.s32.totalorder %s96, %s97
      %p109 = scmp.eq.s32.totalorder %s24, 1
      %p110 = por %p108, %p109
      %p112 = scmp.ne.s32.totalorder %s97, %s111
      %p113 = scmp.eq.s32.totalorder %s24, 0
      %p114 = por %p112, %p113
      %s115 = ssub.s32 %s18, %s25
      %p116 = scmp.eq.s32.totalorder %s115, 0
      %s118 = sadd.s32 %s117, 1
      %s119 = scalar_select %p116, %s117, %s118
      %p122 = pneg %p116
      %p123 = scmp.eq.s32.totalorder %s18, 1
      %p124 = por %p122, %p123
      %p125 = scmp.ne.s32.totalorder %s117, %s120
      %p126 = scmp.eq.s32.totalorder %s18, 0
      %p127 = por %p125, %p126
      %p128 = scmp.ne.s32.totalorder %s117, %s120
      %p129 = scmp.eq.s32.totalorder %s23, 1
      %p130 = por %p128, %p129
      %p131 = scmp.ne.s32.totalorder %s120, %s121
      %p132 = scmp.eq.s32.totalorder %s23, 0
      %p133 = por %p131, %p132
      %p134 = scmp.ne.s32.totalorder %s120, %s121
      %p135 = scmp.eq.s32.totalorder %s24, 1
      %p136 = por %p134, %p135
      %p138 = scmp.ne.s32.totalorder %s121, %s137
      %p139 = scmp.eq.s32.totalorder %s24, 0
      %p140 = por %p138, %p139
      %s141 = ssub.s32 %s18, %s25
      %p142 = scmp.eq.s32.totalorder %s141, 0
      %s144 = sadd.s32 %s143, 1
      %s145 = scalar_select %p142, %s143, %s144
      %p148 = pneg %p142
      %p149 = scmp.eq.s32.totalorder %s18, 1
      %p150 = por %p148, %p149
      %p151 = scmp.ne.s32.totalorder %s143, %s146
      %p152 = scmp.eq.s32.totalorder %s18, 0
      %p153 = por %p151, %p152
      %p154 = scmp.ne.s32.totalorder %s143, %s146
      %p155 = scmp.eq.s32.totalorder %s23, 1
      %p156 = por %p154, %p155
      %p157 = scmp.ne.s32.totalorder %s146, %s147
      %p158 = scmp.eq.s32.totalorder %s23, 0
      %p159 = por %p157, %p158
      %p160 = scmp.ne.s32.totalorder %s146, %s147
      %p161 = scmp.eq.s32.totalorder %s24, 1
      %p162 = por %p160, %p161
      %p164 = scmp.ne.s32.totalorder %s147, %s163
      %p165 = scmp.eq.s32.totalorder %s24, 0
      %p166 = por %p164, %p165
      %p167 = scmp.le.s32.totalorder 1, %s18
      %p168 = scmp.lt.s32.totalorder %s18, 3
      %p169 = pnand %p167, %p168
      %p170 = pneg %p169
      // Predicated region
      $region9: #{tpu_custom_call.1} parent=5 // pred_check
        _
      $region10: #{tpu_custom_call.1} parent=5 // pred_check_branch
        %172 = sbr.rel (%p169) target = $region12
      $region11: #{tpu_custom_call.1} parent=5 // pred_region
        %s173 = ssub.s32 %s18, 1
        // Predicated region
        $region13: #{tpu_custom_call.1} parent=11 // pred_check
          %p174 = pneg %p65
        $region14: #{tpu_custom_call.1} parent=11 // pred_check_branch
          %176 = sbr.rel (%p174) target = $region16
        $region15: #{tpu_custom_call.1} parent=11 // pred_region
          _
        $region16: #{tpu_custom_call.1} parent=11 // pred_fallthru
          _
        // Predicated region
        $region17: #{tpu_custom_call.1} parent=11 // pred_check
          %p177 = pneg %p86
        $region18: #{tpu_custom_call.1} parent=11 // pred_check_branch
          %179 = sbr.rel (%p177) target = $region20
        $region19: #{tpu_custom_call.1} parent=11 // pred_region
          _
        $region20: #{tpu_custom_call.1} parent=11 // pred_fallthru
          _
        // Predicated region
        $region21: #{tpu_custom_call.1} parent=11 // pred_check
          %p180 = pneg %p107
        $region22: #{tpu_custom_call.1} parent=11 // pred_check_branch
          %182 = sbr.rel (%p180) target = $region24
        $region23: #{tpu_custom_call.1} parent=11 // pred_region
          _
        $region24: #{tpu_custom_call.1} parent=11 // pred_fallthru
          _
      $region12: #{tpu_custom_call.1} parent=5 // pred_fallthru
        _
      %p183 = scmp.lt.s32.totalorder %s18, 2
      // Predicated region
      $region25: #{tpu_custom_call.1} parent=5 // pred_check
        %p184 = pneg %p183
      $region26: #{tpu_custom_call.1} parent=5 // pred_check_branch
        %186 = sbr.rel (%p184) target = $region28
      $region27: #{tpu_custom_call.1} parent=5 // pred_region
        // Predicated region
        $region29: #{tpu_custom_call.1} parent=27 // pred_check
          %p187 = pneg %p38
        $region30: #{tpu_custom_call.1} parent=27 // pred_check_branch
          %189 = sbr.rel (%p187) target = $region32
        $region31: #{tpu_custom_call.1} parent=27 // pred_region
          %p190 = scmp.lt.s32.totalorder %s18, 1
          %s191 = scalar_select %p190, %s18, 1
          %s192 = smul.addr %s191, 2
          %s193 = smul.addr %s192, 8
          %s194 = scalar_lea.vmem %s0, %s193
        $region32: #{tpu_custom_call.1} parent=27 // pred_fallthru
          _
      $region28: #{tpu_custom_call.1} parent=5 // pred_fallthru
        _
      %p195 = scmp.le.s32.totalorder 1, %s18
      %p196 = scmp.lt.s32.totalorder %s18, 3
      %p197 = pnand %p195, %p196
      %p198 = pneg %p197
      // Predicated region
      $region33: #{tpu_custom_call.1} parent=5 // pred_check
        _
      $region34: #{tpu_custom_call.1} parent=5 // pred_check_branch
        %200 = sbr.rel (%p197) target = $region36
      $region35: #{tpu_custom_call.1} parent=5 // pred_region
        %s201 = ssub.s32 %s18, 1
        %p202 = scmp.lt.s32.totalorder %s23, 1
        %s203 = scalar_select %p202, %s23, 1
        %s204 = smul.addr %s203, 2
        %s205 = smul.addr %s204, 8
        %s206 = scalar_lea.vmem %s0, %s205
        %p207 = pneg %p44
        %p208 = pneg %p41
        %p209 = pneg %p65
        %p210 = pneg %p62
        %p211 = pneg %p86
        %p212 = pneg %p83
        %p213 = pneg %p107
        %p214 = pneg %p104
        %p215 = pneg %p133
        %p216 = pneg %p130
        %s217 = sand.u32 %s120, 1
        %s218 = scalar_lea.sflag [#allocation3], %s217
        %s219 = sand.u32 %s120, 1
        %s220 = smul.addr %s219, 16
        %s221 = scalar_lea.vmem [#allocation2], %s220
        %p222 = pneg %p159
        %p223 = pneg %p156
        %s224 = sand.u32 %s146, 1
        %s225 = scalar_lea.sflag [#allocation5], %s224
        %s226 = sand.u32 %s146, 1
        %s227 = smul.addr %s226, 16
        %s228 = scalar_lea.vmem [#allocation4], %s227
        %p229 = scmp.lt.s32.totalorder %s23, 1
        %s230 = scalar_select %p229, %s23, 1
        %s231 = smul.addr %s230, 2
        %s232 = smul.addr %s231, 8
        %s233 = scalar_lea.vmem %s0, %s232
        %v234 = vld [vmem:[%s233] sm:$0xff]
        %v235 = vld [vmem:[%s233 + $0x8] sm:$0xff]
        %v236 = vmul.f32 %v234, 0.17677669
        %v237 = vmul.f32 %v235, 0.17677669
        %vm238 = vcmask 261120
        %v240 = vsel %vm238, %v236, 0
        %v243 = vsel %vm238, %v237, 0
        %v246 = vsel %vm238, %v234, 0
        %v249 = vsel %vm238, %v235, 0
        %251 = vmatprep.subr.mxu0 0.0
        %252 = vmatpush1.xpose.msra.mxu0 %v246
        %253 = vmatprep.subr.mxu0 0.0
        %254 = vmatpush1.xpose.msra.mxu0 %v249
        %255 = vmatprep.subr.mxu0 0.0
        %256 = vmatpush1.xpose.msra.mxu0 0.0
        %257 = vmatprep.subr.mxu0 0.0
        %258 = vmatpush1.xpose.msra.mxu0 0.0
        %259 = vmatprep.subr.mxu0 0.0
        %260 = vmatpush1.xpose.msra.mxu0 0.0
        %261 = vmatprep.subr.mxu0 0.0
        %262 = vmatpush1.xpose.msra.mxu0 0.0
        %263 = vmatprep.subr.mxu0 0.0
        %264 = vmatpush1.xpose.msra.mxu0 0.0
        %265 = vmatprep.subr.mxu0 0.0
        %266 = vmatpush1.xpose.msra.mxu0 0.0
        %267 = vmatprep.subr.mxu0 0.0
        %268 = vmatpush1.xpose.msra.mxu0 0.0
        %269 = vmatprep.subr.mxu0 0.0
        %270 = vmatpush1.xpose.msra.mxu0 0.0
        %271 = vmatprep.subr.mxu0 0.0
        %272 = vmatpush1.xpose.msra.mxu0 0.0
        %273 = vmatprep.subr.mxu0 0.0
        %274 = vmatpush1.xpose.msra.mxu0 0.0
        %275 = vmatprep.subr.mxu0 0.0
        %276 = vmatpush1.xpose.msra.mxu0 0.0
        %277 = vmatprep.subr.mxu0 0.0
        %278 = vmatpush1.xpose.msra.mxu0 0.0
        %279 = vmatprep.subr.mxu0 0.0
        %280 = vmatpush1.xpose.msra.mxu0 0.0
        %281 = vmatprep.subr.mxu0 0.0
        %282 = vmatpush1.xpose.msra.mxu0 0.0
        %283 = vmatprep.subr.mxu0 0.0
        %284 = vmatpush1.xpose.msra.mxu0 0.0
        %285 = vmatprep.subr.mxu0 0.0
        %286 = vmatpush1.xpose.msra.mxu0 0.0
        %287 = vmatprep.subr.mxu0 0.0
        %288 = vmatpush1.xpose.msra.mxu0 0.0
        %289 = vmatprep.subr.mxu0 0.0
        %290 = vmatpush1.xpose.msra.mxu0 0.0
        %291 = vmatprep.subr.mxu0 0.0
        %292 = vmatpush1.xpose.msra.mxu0 0.0
        %293 = vmatprep.subr.mxu0 0.0
        %294 = vmatpush1.xpose.msra.mxu0 0.0
        %295 = vmatprep.subr.mxu0 0.0
        %296 = vmatpush1.xpose.msra.mxu0 0.0
        %297 = vmatprep.subr.mxu0 0.0
        %298 = vmatpush1.xpose.msra.mxu0 0.0
        %299 = vmatprep.subr.mxu0 0.0
        %300 = vmatpush1.xpose.msra.mxu0 0.0
        %301 = vmatprep.subr.mxu0 0.0
        %302 = vmatpush1.xpose.msra.mxu0 0.0
        %303 = vmatprep.subr.mxu0 0.0
        %304 = vmatpush1.xpose.msra.mxu0 0.0
        %305 = vmatprep.subr.mxu0 0.0
        %306 = vmatpush1.xpose.msra.mxu0 0.0
        %307 = vmatprep.subr.mxu0 0.0
        %308 = vmatpush1.xpose.msra.mxu0 0.0
        %309 = vmatprep.subr.mxu0 0.0
        %310 = vmatpush1.xpose.msra.mxu0 0.0
        %311 = vmatprep.subr.mxu0 0.0
        %312 = vmatpush1.xpose.msra.mxu0 0.0
        %313 = vmatprep.subr.mxu0 0.0
        %314 = vmatpush1.xpose.msra.mxu0 0.0
        %315 = vmatprep.mubr.f32.mxu0 0.0
        %316 = vmatmul.mubr.f32.gmra.mrb[0].mxu0 %v240
        %v317 = vpop.f32.mrb[0].mxu0
        %v318 = vadd.f32 0.0, %v317
        %v319 = vpop.f32.mrb[0].mxu0
        %320 = vmatprep.mubr.f32.mxu0 0.0
        %321 = vmatmul.mubr.f32.gmra.mrb[0].mxu0 %v243
        %v322 = vpop.f32.mrb[0].mxu0
        %v323 = vadd.f32 0.0, %v322
        %v324 = vpop.f32.mrb[0].mxu0
        %325 = vdwg.mxu0
        %vm326 = vcmask 130048
        %v327 = vsel %vm326, %v318, -inf
        %328 = vmax.xlane.f32.xlu0 %v327
        %v329 = vpop.xlane.xlu0 %328
        %v330 = vsel %vm326, %v323, -inf
        %331 = vmax.xlane.f32.xlu0 %v330
        %v332 = vpop.xlane.xlu0 %331
        %v333 = vsub.f32 %v318, %v329
        %v334 = vsub.f32 %v323, %v332
        %v335 = vmul.f32 %v333, 1.442695
        %v336 = vpow.pop %v335
        %v337 = vmul.f32 %v334, 1.442695
        %v338 = vpow.pop %v337
        %v339 = vsel %vm326, %v336, 0.0
        %340 = vadd.xlane.f32.xlu0 %v339
        %v341 = vpop.xlane.xlu0 %340
        %v342 = vsel %vm326, %v338, 0.0
        %343 = vadd.xlane.f32.xlu0 %v342
        %v344 = vpop.xlane.xlu0 %343
        %v345 = vrcp.pop %v341
        %v346 = vmul.f32 %v336, %v345
        %v347 = vrcp.pop %v344
        %v348 = vmul.f32 %v338, %v347
        %v350 = vsel %vm326, %v346, 0
        %v353 = vsel %vm326, %v348, 0
        %355 = vmatprep.subr.mxu0 0.0
        %356 = vmatpush1.msra.mxu0 %v234
        %357 = vmatprep.subr.mxu0 0.0
        %358 = vmatpush1.msra.mxu0 %v235
        %359 = vmatprep.subr.mxu0 0.0
        %360 = vmatpush1.msra.mxu0 0.0
        %361 = vmatprep.subr.mxu0 0.0
        %362 = vmatpush1.msra.mxu0 0.0
        %363 = vmatprep.subr.mxu0 0.0
        %364 = vmatpush1.msra.mxu0 0.0
        %365 = vmatprep.subr.mxu0 0.0
        %366 = vmatpush1.msra.mxu0 0.0
        %367 = vmatprep.subr.mxu0 0.0
        %368 = vmatpush1.msra.mxu0 0.0
        %369 = vmatprep.subr.mxu0 0.0
        %370 = vmatpush1.msra.mxu0 0.0
        %371 = vmatprep.subr.mxu0 0.0
        %372 = vmatpush1.msra.mxu0 0.0
        %373 = vmatprep.subr.mxu0 0.0
        %374 = vmatpush1.msra.mxu0 0.0
        %375 = vmatprep.subr.mxu0 0.0
        %376 = vmatpush1.msra.mxu0 0.0
        %377 = vmatprep.subr.mxu0 0.0
        %378 = vmatpush1.msra.mxu0 0.0
        %379 = vmatprep.subr.mxu0 0.0
        %380 = vmatpush1.msra.mxu0 0.0
        %381 = vmatprep.subr.mxu0 0.0
        %382 = vmatpush1.msra.mxu0 0.0
        %383 = vmatprep.subr.mxu0 0.0
        %384 = vmatpush1.msra.mxu0 0.0
        %385 = vmatprep.subr.mxu0 0.0
        %386 = vmatpush1.msra.mxu0 0.0
        %387 = vmatprep.subr.mxu0 0.0
        %388 = vmatpush1.msra.mxu0 0.0
        %389 = vmatprep.subr.mxu0 0.0
        %390 = vmatpush1.msra.mxu0 0.0
        %391 = vmatprep.subr.mxu0 0.0
        %392 = vmatpush1.msra.mxu0 0.0
        %393 = vmatprep.subr.mxu0 0.0
        %394 = vmatpush1.msra.mxu0 0.0
        %395 = vmatprep.subr.mxu0 0.0
        %396 = vmatpush1.msra.mxu0 0.0
        %397 = vmatprep.subr.mxu0 0.0
        %398 = vmatpush1.msra.mxu0 0.0
        %399 = vmatprep.subr.mxu0 0.0
        %400 = vmatpush1.msra.mxu0 0.0
        %401 = vmatprep.subr.mxu0 0.0
        %402 = vmatpush1.msra.mxu0 0.0
        %403 = vmatprep.subr.mxu0 0.0
        %404 = vmatpush1.msra.mxu0 0.0
        %405 = vmatprep.subr.mxu0 0.0
        %406 = vmatpush1.msra.mxu0 0.0
        %407 = vmatprep.subr.mxu0 0.0
        %408 = vmatpush1.msra.mxu0 0.0
        %409 = vmatprep.subr.mxu0 0.0
        %410 = vmatpush1.msra.mxu0 0.0
        %411 = vmatprep.subr.mxu0 0.0
        %412 = vmatpush1.msra.mxu0 0.0
        %413 = vmatprep.subr.mxu0 0.0
        %414 = vmatpush1.msra.mxu0 0.0
        %415 = vmatprep.subr.mxu0 0.0
        %416 = vmatpush1.msra.mxu0 0.0
        %417 = vmatprep.subr.mxu0 0.0
        %418 = vmatpush1.msra.mxu0 0.0
        %419 = vmatprep.mubr.f32.mxu0 0.0
        %420 = vmatmul.mubr.f32.gmra.mrb[0].mxu0 %v350
        %v421 = vpop.f32.mrb[0].mxu0
        %v422 = vadd.f32 0.0, %v421
        %v423 = vpop.f32.mrb[0].mxu0
        %424 = vmatprep.mubr.f32.mxu0 0.0
        %425 = vmatmul.mubr.f32.gmra.mrb[0].mxu0 %v353
        %v426 = vpop.f32.mrb[0].mxu0
        %v427 = vadd.f32 0.0, %v426
        %v428 = vpop.f32.mrb[0].mxu0
        %429 = vdwg.mxu0
        %430 = vst.msk [vmem:[%s228] sm:$0xff] %vm326, %v346
        %431 = vst.msk [vmem:[%s228 + $0x8] sm:$0xff] %vm326, %v348
        %v432 = vld [vmem:[%s3] sm:$0xff]
        %v433 = vld [vmem:[%s3 + $0x8] sm:$0xff]
        %v434 = vadd.f32 %v234, %v422
        %v435 = vadd.f32 %v235, %v427
        %v437 = vsel %vm326, %v432, 0
        %v440 = vsel %vm326, %v433, 0
        %442 = vmatprep.subr.mxu0 0.0
        %443 = vmatpush1.msra.mxu0 %v434
        %444 = vmatprep.subr.mxu0 0.0
        %445 = vmatpush1.msra.mxu0 %v435
        %446 = vmatprep.subr.mxu0 0.0
        %447 = vmatpush1.msra.mxu0 0.0
        %448 = vmatprep.subr.mxu0 0.0
        %449 = vmatpush1.msra.mxu0 0.0
        %450 = vmatprep.subr.mxu0 0.0
        %451 = vmatpush1.msra.mxu0 0.0
        %452 = vmatprep.subr.mxu0 0.0
        %453 = vmatpush1.msra.mxu0 0.0
        %454 = vmatprep.subr.mxu0 0.0
        %455 = vmatpush1.msra.mxu0 0.0
        %456 = vmatprep.subr.mxu0 0.0
        %457 = vmatpush1.msra.mxu0 0.0
        %458 = vmatprep.subr.mxu0 0.0
        %459 = vmatpush1.msra.mxu0 0.0
        %460 = vmatprep.subr.mxu0 0.0
        %461 = vmatpush1.msra.mxu0 0.0
        %462 = vmatprep.subr.mxu0 0.0
        %463 = vmatpush1.msra.mxu0 0.0
        %464 = vmatprep.subr.mxu0 0.0
        %465 = vmatpush1.msra.mxu0 0.0
        %466 = vmatprep.subr.mxu0 0.0
        %467 = vmatpush1.msra.mxu0 0.0
        %468 = vmatprep.subr.mxu0 0.0
        %469 = vmatpush1.msra.mxu0 0.0
        %470 = vmatprep.subr.mxu0 0.0
        %471 = vmatpush1.msra.mxu0 0.0
        %472 = vmatprep.subr.mxu0 0.0
        %473 = vmatpush1.msra.mxu0 0.0
        %474 = vmatprep.subr.mxu0 0.0
        %475 = vmatpush1.msra.mxu0 0.0
        %476 = vmatprep.subr.mxu0 0.0
        %477 = vmatpush1.msra.mxu0 0.0
        %478 = vmatprep.subr.mxu0 0.0
        %479 = vmatpush1.msra.mxu0 0.0
        %480 = vmatprep.subr.mxu0 0.0
        %481 = vmatpush1.msra.mxu0 0.0
        %482 = vmatprep.subr.mxu0 0.0
        %483 = vmatpush1.msra.mxu0 0.0
        %484 = vmatprep.subr.mxu0 0.0
        %485 = vmatpush1.msra.mxu0 0.0
        %486 = vmatprep.subr.mxu0 0.0
        %487 = vmatpush1.msra.mxu0 0.0
        %488 = vmatprep.subr.mxu0 0.0
        %489 = vmatpush1.msra.mxu0 0.0
        %490 = vmatprep.subr.mxu0 0.0
        %491 = vmatpush1.msra.mxu0 0.0
        %492 = vmatprep.subr.mxu0 0.0
        %493 = vmatpush1.msra.mxu0 0.0
        %494 = vmatprep.subr.mxu0 0.0
        %495 = vmatpush1.msra.mxu0 0.0
        %496 = vmatprep.subr.mxu0 0.0
        %497 = vmatpush1.msra.mxu0 0.0
        %498 = vmatprep.subr.mxu0 0.0
        %499 = vmatpush1.msra.mxu0 0.0
        %500 = vmatprep.subr.mxu0 0.0
        %501 = vmatpush1.msra.mxu0 0.0
        %502 = vmatprep.subr.mxu0 0.0
        %503 = vmatpush1.msra.mxu0 0.0
        %504 = vmatprep.subr.mxu0 0.0
        %505 = vmatpush1.msra.mxu0 0.0
        %506 = vmatprep.mubr.f32.mxu0 0.0
        %507 = vmatmul.mubr.f32.gmra.mrb[0].mxu0 %v437
        %v508 = vpop.f32.mrb[0].mxu0
        %v509 = vadd.f32 0.0, %v508
        %v510 = vpop.f32.mrb[0].mxu0
        %511 = vmatprep.mubr.f32.mxu0 0.0
        %512 = vmatmul.mubr.f32.gmra.mrb[0].mxu0 %v440
        %v513 = vpop.f32.mrb[0].mxu0
        %v514 = vadd.f32 0.0, %v513
        %v515 = vpop.f32.mrb[0].mxu0
        %516 = vdwg.mxu0
        %v517 = vsub.f32 %v434, %v509
        %v518 = vsub.f32 %v435, %v514
        %v519 = vld [vmem:[%s1] sm:$0xff]
        %v520 = vld [vmem:[%s1 + $0x8] sm:$0xff]
        %v521 = vld [vmem:[%s1 + $0x10] sm:$0xff]
        %v522 = vld [vmem:[%s1 + $0x18] sm:$0xff]
        %v524 = vsel %vm238, %v517, 0
        %v527 = vsel %vm238, %v518, 0
        %529 = vmatprep.subr.mxu0 0.0
        %530 = vmatpush1.msra.mxu0 %v519
        %531 = vmatprep.subr.mxu0 0.0
        %532 = vmatpush1.msra.mxu0 %v520
        %533 = vmatprep.subr.mxu0 0.0
        %534 = vmatpush1.msra.mxu0 %v521
        %535 = vmatprep.subr.mxu0 0.0
        %536 = vmatpush1.msra.mxu0 %v522
        %537 = vmatprep.subr.mxu0 0.0
        %538 = vmatpush1.msra.mxu0 0.0
        %539 = vmatprep.subr.mxu0 0.0
        %540 = vmatpush1.msra.mxu0 0.0
        %541 = vmatprep.subr.mxu0 0.0
        %542 = vmatpush1.msra.mxu0 0.0
        %543 = vmatprep.subr.mxu0 0.0
        %544 = vmatpush1.msra.mxu0 0.0
        %545 = vmatprep.subr.mxu0 0.0
        %546 = vmatpush1.msra.mxu0 0.0
        %547 = vmatprep.subr.mxu0 0.0
        %548 = vmatpush1.msra.mxu0 0.0
        %549 = vmatprep.subr.mxu0 0.0
        %550 = vmatpush1.msra.mxu0 0.0
        %551 = vmatprep.subr.mxu0 0.0
        %552 = vmatpush1.msra.mxu0 0.0
        %553 = vmatprep.subr.mxu0 0.0
        %554 = vmatpush1.msra.mxu0 0.0
        %555 = vmatprep.subr.mxu0 0.0
        %556 = vmatpush1.msra.mxu0 0.0
        %557 = vmatprep.subr.mxu0 0.0
        %558 = vmatpush1.msra.mxu0 0.0
        %559 = vmatprep.subr.mxu0 0.0
        %560 = vmatpush1.msra.mxu0 0.0
        %561 = vmatprep.subr.mxu0 0.0
        %562 = vmatpush1.msra.mxu0 0.0
        %563 = vmatprep.subr.mxu0 0.0
        %564 = vmatpush1.msra.mxu0 0.0
        %565 = vmatprep.subr.mxu0 0.0
        %566 = vmatpush1.msra.mxu0 0.0
        %567 = vmatprep.subr.mxu0 0.0
        %568 = vmatpush1.msra.mxu0 0.0
        %569 = vmatprep.subr.mxu0 0.0
        %570 = vmatpush1.msra.mxu0 0.0
        %571 = vmatprep.subr.mxu0 0.0
        %572 = vmatpush1.msra.mxu0 0.0
        %573 = vmatprep.subr.mxu0 0.0
        %574 = vmatpush1.msra.mxu0 0.0
        %575 = vmatprep.subr.mxu0 0.0
        %576 = vmatpush1.msra.mxu0 0.0
        %577 = vmatprep.subr.mxu0 0.0
        %578 = vmatpush1.msra.mxu0 0.0
        %579 = vmatprep.subr.mxu0 0.0
        %580 = vmatpush1.msra.mxu0 0.0
        %581 = vmatprep.subr.mxu0 0.0
        %582 = vmatpush1.msra.mxu0 0.0
        %583 = vmatprep.subr.mxu0 0.0
        %584 = vmatpush1.msra.mxu0 0.0
        %585 = vmatprep.subr.mxu0 0.0
        %586 = vmatpush1.msra.mxu0 0.0
        %587 = vmatprep.subr.mxu0 0.0
        %588 = vmatpush1.msra.mxu0 0.0
        %589 = vmatprep.subr.mxu0 0.0
        %590 = vmatpush1.msra.mxu0 0.0
        %591 = vmatprep.subr.mxu0 0.0
        %592 = vmatpush1.msra.mxu0 0.0
        %593 = vmatprep.mubr.f32.mxu0 0.0
        %594 = vmatmul.mubr.f32.gmra.mrb[0].mxu0 %v524
        %v595 = vpop.f32.mrb[0].mxu0
        %v596 = vadd.f32 0.0, %v595
        %v597 = vpop.f32.mrb[0].mxu0
        %598 = vmatprep.mubr.f32.mxu0 0.0
        %599 = vmatmul.mubr.f32.gmra.mrb[0].mxu0 %v527
        %v600 = vpop.f32.mrb[0].mxu0
        %v601 = vadd.f32 0.0, %v600
        %v602 = vpop.f32.mrb[0].mxu0
        %603 = vdwg.mxu0
        %v604 = vmax.f32 %v596, 0.0
        %v605 = vmax.f32 %v601, 0.0
        %v606 = vld [vmem:[%s2] sm:$0xff]
        %v607 = vld [vmem:[%s2 + $0x8] sm:$0xff]
        %v608 = vld [vmem:[%s2 + $0x10] sm:$0xff]
        %v609 = vld [vmem:[%s2 + $0x18] sm:$0xff]
        %v610 = vld [vmem:[%s2 + $0x20] sm:$0xff]
        %v611 = vld [vmem:[%s2 + $0x28] sm:$0xff]
        %v612 = vld [vmem:[%s2 + $0x30] sm:$0xff]
        %v613 = vld [vmem:[%s2 + $0x38] sm:$0xff]
        %v614 = vld [vmem:[%s2 + $0x40] sm:$0xff]
        %v615 = vld [vmem:[%s2 + $0x48] sm:$0xff]
        %v616 = vld [vmem:[%s2 + $0x50] sm:$0xff]
        %v617 = vld [vmem:[%s2 + $0x58] sm:$0xff]
        %v618 = vld [vmem:[%s2 + $0x60] sm:$0xff]
        %v619 = vld [vmem:[%s2 + $0x68] sm:$0xff]
        %v620 = vld [vmem:[%s2 + $0x70] sm:$0xff]
        %v621 = vld [vmem:[%s2 + $0x78] sm:$0xff]
        %622 = vmatprep.subr.mxu0 0.0
        %623 = vmatpush1.msra.mxu0 %v606
        %624 = vmatprep.subr.mxu0 0.0
        %625 = vmatpush1.msra.mxu0 %v607
        %626 = vmatprep.subr.mxu0 0.0
        %627 = vmatpush1.msra.mxu0 %v608
        %628 = vmatprep.subr.mxu0 0.0
        %629 = vmatpush1.msra.mxu0 %v609
        %630 = vmatprep.subr.mxu0 0.0
        %631 = vmatpush1.msra.mxu0 %v610
        %632 = vmatprep.subr.mxu0 0.0
        %633 = vmatpush1.msra.mxu0 %v611
        %634 = vmatprep.subr.mxu0 0.0
        %635 = vmatpush1.msra.mxu0 %v612
        %636 = vmatprep.subr.mxu0 0.0
        %637 = vmatpush1.msra.mxu0 %v613
        %638 = vmatprep.subr.mxu0 0.0
        %639 = vmatpush1.msra.mxu0 %v614
        %640 = vmatprep.subr.mxu0 0.0
        %641 = vmatpush1.msra.mxu0 %v615
        %642 = vmatprep.subr.mxu0 0.0
        %643 = vmatpush1.msra.mxu0 %v616
        %644 = vmatprep.subr.mxu0 0.0
        %645 = vmatpush1.msra.mxu0 %v617
        %646 = vmatprep.subr.mxu0 0.0
        %647 = vmatpush1.msra.mxu0 %v618
        %648 = vmatprep.subr.mxu0 0.0
        %649 = vmatpush1.msra.mxu0 %v619
        %650 = vmatprep.subr.mxu0 0.0
        %651 = vmatpush1.msra.mxu0 %v620
        %652 = vmatprep.subr.mxu0 0.0
        %653 = vmatpush1.msra.mxu0 %v621
        %654 = vmatprep.subr.mxu0 0.0
        %655 = vmatpush1.msra.mxu0 0.0
        %656 = vmatprep.subr.mxu0 0.0
        %657 = vmatpush1.msra.mxu0 0.0
        %658 = vmatprep.subr.mxu0 0.0
        %659 = vmatpush1.msra.mxu0 0.0
        %660 = vmatprep.subr.mxu0 0.0
        %661 = vmatpush1.msra.mxu0 0.0
        %662 = vmatprep.subr.mxu0 0.0
        %663 = vmatpush1.msra.mxu0 0.0
        %664 = vmatprep.subr.mxu0 0.0
        %665 = vmatpush1.msra.mxu0 0.0
        %666 = vmatprep.subr.mxu0 0.0
        %667 = vmatpush1.msra.mxu0 0.0
        %668 = vmatprep.subr.mxu0 0.0
        %669 = vmatpush1.msra.mxu0 0.0
        %670 = vmatprep.subr.mxu0 0.0
        %671 = vmatpush1.msra.mxu0 0.0
        %672 = vmatprep.subr.mxu0 0.0
        %673 = vmatpush1.msra.mxu0 0.0
        %674 = vmatprep.subr.mxu0 0.0
        %675 = vmatpush1.msra.mxu0 0.0
        %676 = vmatprep.subr.mxu0 0.0
        %677 = vmatpush1.msra.mxu0 0.0
        %678 = vmatprep.subr.mxu0 0.0
        %679 = vmatpush1.msra.mxu0 0.0
        %680 = vmatprep.subr.mxu0 0.0
        %681 = vmatpush1.msra.mxu0 0.0
        %682 = vmatprep.subr.mxu0 0.0
        %683 = vmatpush1.msra.mxu0 0.0
        %684 = vmatprep.subr.mxu0 0.0
        %685 = vmatpush1.msra.mxu0 0.0
        %686 = vmatprep.mubr.f32.mxu0 0.0
        %687 = vmatmul.mubr.f32.gmra.mrb[0].mxu0 %v604
        %v688 = vpop.f32.mrb[0].mxu0
        %v689 = vadd.f32 0.0, %v688
        %v690 = vpop.f32.mrb[0].mxu0
        %691 = vmatprep.mubr.f32.mxu0 0.0
        %692 = vmatmul.mubr.f32.gmra.mrb[0].mxu0 %v605
        %v693 = vpop.f32.mrb[0].mxu0
        %v694 = vadd.f32 0.0, %v693
        %v695 = vpop.f32.mrb[0].mxu0
        %696 = vdwg.mxu0
        %v697 = vadd.f32 %v517, %v689
        %v698 = vadd.f32 %v518, %v694
        %699 = vmatprep.subr.mxu0 0.0
        %700 = vmatpush1.msra.mxu0 %v697
        %701 = vmatprep.subr.mxu0 0.0
        %702 = vmatpush1.msra.mxu0 %v698
        %703 = vmatprep.subr.mxu0 0.0
        %704 = vmatpush1.msra.mxu0 0.0
        %705 = vmatprep.subr.mxu0 0.0
        %706 = vmatpush1.msra.mxu0 0.0
        %707 = vmatprep.subr.mxu0 0.0
        %708 = vmatpush1.msra.mxu0 0.0
        %709 = vmatprep.subr.mxu0 0.0
        %710 = vmatpush1.msra.mxu0 0.0
        %711 = vmatprep.subr.mxu0 0.0
        %712 = vmatpush1.msra.mxu0 0.0
        %713 = vmatprep.subr.mxu0 0.0
        %714 = vmatpush1.msra.mxu0 0.0
        %715 = vmatprep.subr.mxu0 0.0
        %716 = vmatpush1.msra.mxu0 0.0
        %717 = vmatprep.subr.mxu0 0.0
        %718 = vmatpush1.msra.mxu0 0.0
        %719 = vmatprep.subr.mxu0 0.0
        %720 = vmatpush1.msra.mxu0 0.0
        %721 = vmatprep.subr.mxu0 0.0
        %722 = vmatpush1.msra.mxu0 0.0
        %723 = vmatprep.subr.mxu0 0.0
        %724 = vmatpush1.msra.mxu0 0.0
        %725 = vmatprep.subr.mxu0 0.0
        %726 = vmatpush1.msra.mxu0 0.0
        %727 = vmatprep.subr.mxu0 0.0
        %728 = vmatpush1.msra.mxu0 0.0
        %729 = vmatprep.subr.mxu0 0.0
        %730 = vmatpush1.msra.mxu0 0.0
        %731 = vmatprep.subr.mxu0 0.0
        %732 = vmatpush1.msra.mxu0 0.0
        %733 = vmatprep.subr.mxu0 0.0
        %734 = vmatpush1.msra.mxu0 0.0
        %735 = vmatprep.subr.mxu0 0.0
        %736 = vmatpush1.msra.mxu0 0.0
        %737 = vmatprep.subr.mxu0 0.0
        %738 = vmatpush1.msra.mxu0 0.0
        %739 = vmatprep.subr.mxu0 0.0
        %740 = vmatpush1.msra.mxu0 0.0
        %741 = vmatprep.subr.mxu0 0.0
        %742 = vmatpush1.msra.mxu0 0.0
        %743 = vmatprep.subr.mxu0 0.0
        %744 = vmatpush1.msra.mxu0 0.0
        %745 = vmatprep.subr.mxu0 0.0
        %746 = vmatpush1.msra.mxu0 0.0
        %747 = vmatprep.subr.mxu0 0.0
        %748 = vmatpush1.msra.mxu0 0.0
        %749 = vmatprep.subr.mxu0 0.0
        %750 = vmatpush1.msra.mxu0 0.0
        %751 = vmatprep.subr.mxu0 0.0
        %752 = vmatpush1.msra.mxu0 0.0
        %753 = vmatprep.subr.mxu0 0.0
        %754 = vmatpush1.msra.mxu0 0.0
        %755 = vmatprep.subr.mxu0 0.0
        %756 = vmatpush1.msra.mxu0 0.0
        %757 = vmatprep.subr.mxu0 0.0
        %758 = vmatpush1.msra.mxu0 0.0
        %759 = vmatprep.subr.mxu0 0.0
        %760 = vmatpush1.msra.mxu0 0.0
        %761 = vmatprep.subr.mxu0 0.0
        %762 = vmatpush1.msra.mxu0 0.0
        %763 = vmatprep.mubr.f32.mxu0 0.0
        %764 = vmatmul.mubr.f32.gmra.mrb[0].mxu0 %v437
        %v765 = vpop.f32.mrb[0].mxu0
        %v766 = vadd.f32 0.0, %v765
        %v767 = vpop.f32.mrb[0].mxu0
        %768 = vmatprep.mubr.f32.mxu0 0.0
        %769 = vmatmul.mubr.f32.gmra.mrb[0].mxu0 %v440
        %v770 = vpop.f32.mrb[0].mxu0
        %v771 = vadd.f32 0.0, %v770
        %v772 = vpop.f32.mrb[0].mxu0
        %773 = vdwg.mxu0
        %v774 = vsub.f32 %v697, %v766
        %v775 = vsub.f32 %v698, %v771
        %776 = vst.msk [vmem:[%s221] sm:$0xff] %vm238, %v774
        %777 = vst.msk [vmem:[%s221 + $0x8] sm:$0xff] %vm238, %v775
        %s778 = sand.u32 %s120, 1
        %s779 = scalar_lea.sflag [#allocation3], %s778
        %s780 = sand.u32 %s120, 1
        %s781 = smul.addr %s780, 16
        %s782 = scalar_lea.vmem [#allocation2], %s781
        %s783 = sand.u32 %s146, 1
        %s784 = scalar_lea.sflag [#allocation5], %s783
        %s785 = sand.u32 %s146, 1
        %s786 = smul.addr %s785, 16
        %s787 = scalar_lea.vmem [#allocation4], %s786
        // Predicated region
        $region37: #{tpu_custom_call.1} parent=35 // pred_check
          %p788 = pneg %p130
        $region38: #{tpu_custom_call.1} parent=35 // pred_check_branch
          %790 = sbr.rel (%p788) target = $region40
        $region39: #{tpu_custom_call.1} parent=35 // pred_region
          %s792 = ssub.s32 256, 256
          %793 = vsyncadd %s779, %s792
          %s794 = smul.addr %s23, 2
          %s795 = smul.addr %s794, 128
          %s796 = scalar_lea.hbm %s4, %s795
          %s797 = sshll.u32 %s782, 4
          %s798 = int_to_ptr.vmem [resolvable:$true] %s797
          %803 = dma.vmem_to_hbm [thread:$0]  %s798, 256, %s796, %s779, 128, 128, 8
        $region40: #{tpu_custom_call.1} parent=35 // pred_fallthru
          _
        // Predicated region
        $region41: #{tpu_custom_call.1} parent=35 // pred_check
          %p804 = pneg %p156
        $region42: #{tpu_custom_call.1} parent=35 // pred_check_branch
          %806 = sbr.rel (%p804) target = $region44
        $region43: #{tpu_custom_call.1} parent=35 // pred_region
          %s808 = ssub.s32 256, 256
          %809 = vsyncadd %s784, %s808
          %s810 = smul.addr %s23, 2
          %s811 = smul.addr %s810, 128
          %s812 = scalar_lea.hbm %s5, %s811
          %s813 = sshll.u32 %s787, 4
          %s814 = int_to_ptr.vmem [resolvable:$true] %s813
          %819 = dma.vmem_to_hbm [thread:$0]  %s814, 256, %s812, %s784, 128, 128, 8
        $region44: #{tpu_custom_call.1} parent=35 // pred_fallthru
          _
      $region36: #{tpu_custom_call.1} parent=5 // pred_fallthru
        _
      %p820 = scmp.le.s32.totalorder 2, %s18
      // Predicated region
      $region45: #{tpu_custom_call.1} parent=5 // pred_check
        %p821 = pneg %p820
      $region46: #{tpu_custom_call.1} parent=5 // pred_check_branch
        %823 = sbr.rel (%p821) target = $region48
      $region47: #{tpu_custom_call.1} parent=5 // pred_region
        %s824 = ssub.s32 %s18, 2
        // Predicated region
        $region49: #{tpu_custom_call.1} parent=47 // pred_check
          %p825 = pneg %p136
        $region50: #{tpu_custom_call.1} parent=47 // pred_check_branch
          %827 = sbr.rel (%p825) target = $region52
        $region51: #{tpu_custom_call.1} parent=47 // pred_region
          %s828 = sand.u32 %s121, 1
          %s829 = scalar_lea.sflag [#allocation3], %s828
          %s830 = sand.u32 %s121, 1
          %s831 = smul.addr %s830, 16
          %s832 = scalar_lea.vmem [#allocation2], %s831
          %833 = dma.done %s829, 256
        $region52: #{tpu_custom_call.1} parent=47 // pred_fallthru
          _
        // Predicated region
        $region53: #{tpu_custom_call.1} parent=47 // pred_check
          %p834 = pneg %p162
        $region54: #{tpu_custom_call.1} parent=47 // pred_check_branch
          %836 = sbr.rel (%p834) target = $region56
        $region55: #{tpu_custom_call.1} parent=47 // pred_region
          %s837 = sand.u32 %s147, 1
          %s838 = scalar_lea.sflag [#allocation5], %s837
          %s839 = sand.u32 %s147, 1
          %s840 = smul.addr %s839, 16
          %s841 = scalar_lea.vmem [#allocation4], %s840
          %842 = dma.done %s838, 256
        $region56: #{tpu_custom_call.1} parent=47 // pred_fallthru
          _
      $region48: #{tpu_custom_call.1} parent=5 // pred_fallthru
        _
    $region6: #{tpu_custom_call.1} parent=1 // loop_footer
      %s22 = sadd.s32 1, %s18
    $region7: #{tpu_custom_call.1} parent=1 // loop_footer_branch
      %17 = sbr.rel target = $region3
    $region8: #{tpu_custom_call.1} parent=1 // loop_exit
      _
    %843 = vsyncpa [#allocation3], 1
    %s844 = scalar_lea.sflag [#allocation3], 1
    %845 = vsyncpa %s844, 1
    %846 = vsyncpa [#allocation5], 1
    %s847 = scalar_lea.sflag [#allocation5], 1
    %848 = vsyncpa %s847, 1

</llo_original>
